<compile_context>
chip_gen: v6e
topology: v6e:2x2x1
jax: 0.10.0
libtpu: 0.0.40
codegen_flags: <defaults>
</compile_context>

<pallas_src>
import functools

import jax
import jax.numpy as jnp
import numpy as np
from jax.experimental import pallas as pl
from jax.experimental.pallas import tpu as pltpu


# ----------------------------------------------------------------------------
# Pallas kernel: fused PE + 3-layer MLP + residual add + loss partial
# (channels-first layout: features on sublanes, gaussians on lanes)
# ----------------------------------------------------------------------------
def _nonrigid_mlp_kernel(xyz_ref, freq_ref, off_ref,
                         w1x_ref, w1t_ref, b1_ref,
                         w2_ref, b2_ref, w3_ref, b3_ref,
                         out_ref, loss_ref, *, n_valid):
    #   xyz_ref : (3, TM)  f32        freq_ref/off_ref : (2F, 1) f32
    #   w1x_ref : (H, 3)   bf16       w1t_ref : (H, 6F) bf16    b1_ref : (H, 1) f32
    #   w2_ref  : (H, H)   bf16       b2_ref  : (H, 1)  f32
    #   w3_ref  : (3, H)   bf16       b3_ref  : (3, 1)  f32
    #   out_ref : (3, TM)  f32        loss_ref: (8, 128) f32 (per-tile partial)
    xyz = xyz_ref[...]                                       # (3, TM) f32
    tm = xyz.shape[1]

    # --- fused positional encoding ------------------------------------------
    # phases[(c, k), :] = freq[k] * xyz[c, :] + off[k]; the offset column folds
    # cos(x) = sin(x + pi/2) so a SINGLE jnp.sin covers every sin & cos feature.
    fcol = freq_ref[...]                                     # (2F, 1) f32
    ocol = off_ref[...]                                      # (2F, 1) f32
    phases = jnp.concatenate(
        [fcol * xyz[c:c + 1, :] + ocol for c in range(3)], axis=0)  # (6F, TM)
    trig = jnp.sin(phases)                                   # one EUP call, f32

    # --- 3-layer MLP (bf16 MXU operands, f32 accumulation / elementwise) -----
    xyz_bf = xyz.astype(jnp.bfloat16)
    trig_bf = trig.astype(jnp.bfloat16)
    h = (jnp.dot(w1x_ref[...], xyz_bf, preferred_element_type=jnp.float32)
         + jnp.dot(w1t_ref[...], trig_bf, preferred_element_type=jnp.float32)
         + b1_ref[...])                                      # latent folded in b1
    h = jnp.maximum(h, 0.0)
    h = jnp.dot(w2_ref[...], h.astype(jnp.bfloat16),
                preferred_element_type=jnp.float32) + b2_ref[...]
    h = jnp.maximum(h, 0.0)
    delta = jnp.dot(w3_ref[...], h.astype(jnp.bfloat16),
                    preferred_element_type=jnp.float32) + b3_ref[...]

    out_ref[...] = xyz + delta                               # lane-dense store

    # --- fused offset-regularization partial sum (padded lanes masked) -------
    lane = pl.program_id(0) * tm + jax.lax.broadcasted_iota(jnp.int32, (1, tm), 1)
    dsq = jnp.sum(delta * delta, axis=0, keepdims=True)      # (1, TM)
    partial = jnp.sum(jnp.where(lane < n_valid, dsq, 0.0))
    loss_ref[...] = jnp.full(loss_ref.shape, partial, jnp.float32)


def _round_up(x, m):
    return ((x + m - 1) // m) * m


def nonrigid_mlp_pallas(xyz_cn, params, n_freqs, *, tm=4096):
    """Deform gaussian centers.

    xyz_cn: (3, N) f32 centers, channels-first (no wrapper transposes).
    Returns (deformed (3, N) f32, offset_l2 scalar f32 = mean(delta**2)).
    """
    assert xyz_cn.ndim == 2 and xyz_cn.shape[0] == 3, "expected (3, N) centers"
    N = xyz_cn.shape[1]
    d_pe = 3 + 3 * 2 * n_freqs

    w1, b1 = params["w1"], params["b1"]
    w2, b2 = params["w2"], params["b2"]
    w3, b3 = params["w3"], params["b3"]
    latent = params["latent"]
    hidden = w1.shape[1]

    # ---- one-time weight prep (layout / dtype plumbing only) ----------------
    # Latent code is row-constant -> fold its layer-1 contribution into the bias.
    b1_eff = (b1 + latent[None, :] @ w1[d_pe:, :]).T.astype(jnp.float32)   # (H, 1)

    # Layer-1 PE weights, split into the identity (xyz) part and the trig part,
    # with the trig rows permuted into the kernel's coordinate-major
    # [sin f0..fF-1, cos f0..fF-1] order (matches the fused phase construction).
    rows = []
    for c in range(3):
        for r in range(2 * n_freqs):
            i = r if r < n_freqs else r - n_freqs
            base = 3 + 6 * i + (0 if r < n_freqs else 3)
            rows.append(base + c)
    w1x_t = w1[0:3, :].T.astype(jnp.bfloat16)                              # (H, 3)
    w1t_t = w1[np.array(rows), :].T.astype(jnp.bfloat16)                   # (H, 6F)
    w2_t = w2.T.astype(jnp.bfloat16)                                       # (H, H)
    w3_t = w3.T.astype(jnp.bfloat16)                                       # (3, H)
    b2_t = b2.T.astype(jnp.float32)                                        # (H, 1)
    b3_t = b3.T.astype(jnp.float32)                                        # (3, 1)

    # Phase-construction constants: frequencies repeated for the sin and cos
    # halves; cos is produced as sin(x + pi/2) so ONE EUP call covers both.
    freqs = np.array([(2.0 ** i) * np.pi for i in range(n_freqs)], np.float32)
    fcol = jnp.asarray(np.concatenate([freqs, freqs])[:, None])            # (2F, 1)
    ocol = jnp.asarray(np.concatenate(
        [np.zeros(n_freqs, np.float32),
         np.full(n_freqs, np.pi / 2.0, np.float32)])[:, None])             # (2F, 1)

    # ---- tiling --------------------------------------------------------------
    # Big lane tiles amortize the ~0.35 us/step grid overhead; keep >= 2 grid
    # steps so the "parallel" axis can shard across both TensorCores on v7x;
    # 128 floor / 128-aligned.
    tm = max(128, _round_up(int(tm), 128))
    tm = min(tm, max(128, _round_up(pl.cdiv(N, 2), 128)))
    n_pad = _round_up(N, tm)
    n_steps = n_pad // tm

    xyz_in = xyz_cn
    if n_pad != N:
        xyz_in = jnp.pad(xyz_cn, ((0, 0), (0, n_pad - N)))

    resident = lambda i: (0, 0)       # weights/constants: same block every step

    out_pad, loss_blocks = pl.pallas_call(
        functools.partial(_nonrigid_mlp_kernel, n_valid=N),
        out_shape=(
            jax.ShapeDtypeStruct((3, n_pad), jnp.float32),
            jax.ShapeDtypeStruct((8, 128 * n_steps), jnp.float32),
        ),
        grid_spec=pltpu.PrefetchScalarGridSpec(
            num_scalar_prefetch=0,
            grid=(n_steps,),
            in_specs=[
                pl.BlockSpec((3, tm), lambda i: (0, i)),           # xyz (lane-dense)
                pl.BlockSpec((2 * n_freqs, 1), resident),          # freqs
                pl.BlockSpec((2 * n_freqs, 1), resident),          # phase offsets
                pl.BlockSpec((hidden, 3), resident),               # w1 (xyz rows)
                pl.BlockSpec((hidden, 6 * n_freqs), resident),     # w1 (trig rows)
                pl.BlockSpec((hidden, 1), resident),               # b1 (+ latent)
                pl.BlockSpec((hidden, hidden), resident),          # w2
                pl.BlockSpec((hidden, 1), resident),               # b2
                pl.BlockSpec((3, hidden), resident),               # w3
                pl.BlockSpec((3, 1), resident),                    # b3
            ],
            out_specs=[
                pl.BlockSpec((3, tm), lambda i: (0, i)),           # deformed xyz
                pl.BlockSpec((8, 128), lambda i: (0, i)),          # loss partials
            ],
        ),
        compiler_params=pltpu.CompilerParams(
            # Shards the gaussian axis across both TensorCores on v7x.
            dimension_semantics=("parallel",)),
    )(xyz_in, fcol, ocol, w1x_t, w1t_t, b1_eff, w2_t, b2_t, w3_t, b3_t)

    deformed = out_pad if n_pad == N else out_pad[:, :N]
    # Each (8, 128) partial block is a splat of one per-tile scalar.
    offset_l2 = jnp.sum(loss_blocks) / (8.0 * 128.0) / (3.0 * N)
    return deformed, offset_l2


# ----------------------------------------------------------------------------
# Glue: reference positional encoding, parameter init, module-style wrapper
# ----------------------------------------------------------------------------
def positional_encode(xyz, n_freqs):
    """xyz: (N, 3) -> (N, 3 + 3*2*n_freqs).  Reference-only (kernel fuses this)."""
    feats = [xyz]
    for i in range(n_freqs):
        freq = (2.0 ** i) * jnp.pi
        feats.append(jnp.sin(freq * xyz))
        feats.append(jnp.cos(freq * xyz))
    return jnp.concatenate(feats, axis=-1)


class NonRigidDeform:
    """JAX/Pallas counterpart of models/deformer/non_rigid.NonRigidDeform.

    Gaussian centers are carried channels-first: gaussians["xyz"] has shape
    (3, N).  This keeps the kernel's lane-dense layout end-to-end and removes
    the wrapper-side HBM transposes flagged in the performance review.
    """

    def __init__(self, cfg, key):
        self.cfg = cfg
        n_freqs = cfg["n_freqs"]
        latent_dim = cfg["latent_dim"]
        hidden = cfg["hidden"]
        d_pe = 3 + 3 * 2 * n_freqs
        d_in = d_pe + latent_dim

        k1, k2, k3, k4 = jax.random.split(key, 4)
        scale = lambda fan_in: 1.0 / np.sqrt(fan_in)
        self.params = {
            # w1 rows follow the standard interleaved PE order
            # [xyz, sin(f0), cos(f0), sin(f1), cos(f1), ..., latent].
            "w1": jax.random.normal(k1, (d_in, hidden), jnp.float32) * scale(d_in),
            "b1": jnp.zeros((1, hidden), jnp.float32),
            "w2": jax.random.normal(k2, (hidden, hidden), jnp.float32) * scale(hidden),
            "b2": jnp.zeros((1, hidden), jnp.float32),
            # last layer small-init so the initial deformation is ~0
            "w3": jax.random.normal(k3, (hidden, 3), jnp.float32) * 1e-2 * scale(hidden),
            "b3": jnp.zeros((1, 3), jnp.float32),
            # learned per-frame latent / condition code
            "latent": jax.random.normal(k4, (latent_dim,), jnp.float32) * 0.1,
        }

    def forward(self, gaussians, iteration, camera=None, compute_loss=True):
        xyz = gaussians["xyz"]                                  # (3, N) float32
        deformed, offset_l2 = nonrigid_mlp_pallas(
            xyz, self.params, self.cfg["n_freqs"], tm=self.cfg.get("tm", 4096))
        out = dict(gaussians)
        out["xyz"] = deformed
        loss_reg = {}
        if compute_loss:
            loss_reg["nonrigid_offset"] = offset_l2             # fused in-kernel
        return out, loss_reg

    # pure-JAX f32 reference (un-fused, un-folded) for validation
    def forward_ref(self, gaussians):
        xyz = gaussians["xyz"].T                                # (N, 3)
        pe = positional_encode(xyz, self.cfg["n_freqs"])
        lat = jnp.broadcast_to(self.params["latent"][None, :],
                               (xyz.shape[0], self.params["latent"].shape[0]))
        x = jnp.concatenate([pe, lat], axis=-1)
        p = self.params
        h = jnp.maximum(x @ p["w1"] + p["b1"], 0.0)
        h = jnp.maximum(h @ p["w2"] + p["b2"], 0.0)
        delta = h @ p["w3"] + p["b3"]
        return (xyz + delta).T                                  # (3, N)


# ----------------------------------------------------------------------------
if __name__ == "__main__":
    # Small shapes; tm=128 so the (N=300 -> padded 384) input exercises a
    # multi-step grid, the megacore-parallel axis, and the tail pad/mask path.
    cfg = {"n_freqs": 4, "latent_dim": 8, "hidden": 32, "tm": 128}
    key = jax.random.PRNGKey(0)
    k_param, k_xyz = jax.random.split(key)

    deformer = NonRigidDeform(cfg, k_param)

    N = 300  # deliberately NOT a multiple of the tile size
    gaussians = {"xyz": jax.random.normal(k_xyz, (3, N), jnp.float32)}

    out, loss_reg = deformer.forward(gaussians, iteration=0, camera=None)
    deformed = jax.block_until_ready(out["xyz"])
    offset_l2 = jax.block_until_ready(loss_reg["nonrigid_offset"])

    # 1) deformed centers vs pure-f32 reference (bf16 MXU operands -> loosened tol)
    ref = jax.block_until_ready(deformer.forward_ref(gaussians))
    np.testing.assert_allclose(np.asarray(deformed), np.asarray(ref),
                               rtol=2e-3, atol=2e-3)

    # 2) fused regularization loss vs recomputation from the kernel's own output
    recomputed = jnp.mean(jnp.square(deformed - gaussians["xyz"]))
    np.testing.assert_allclose(float(offset_l2), float(recomputed),
                               rtol=1e-3, atol=1e-8)

    print("KERNEL_OK")
</pallas_src>

<mosaic_0001>
module attributes {stable_mosaic.version = 11 : i64} {
  func.func @_nonrigid_mlp_kernel(%arg0: i32, %arg1: memref<3x128xf32, #tpu.memory_space<vmem>>, %arg2: memref<8x1xf32, #tpu.memory_space<vmem>>, %arg3: memref<8x1xf32, #tpu.memory_space<vmem>>, %arg4: memref<32x3xbf16, #tpu.memory_space<vmem>>, %arg5: memref<32x24xbf16, #tpu.memory_space<vmem>>, %arg6: memref<32x1xf32, #tpu.memory_space<vmem>>, %arg7: memref<32x32xbf16, #tpu.memory_space<vmem>>, %arg8: memref<32x1xf32, #tpu.memory_space<vmem>>, %arg9: memref<3x32xbf16, #tpu.memory_space<vmem>>, %arg10: memref<3x1xf32, #tpu.memory_space<vmem>>, %arg11: memref<3x128xf32, #tpu.memory_space<vmem>>, %arg12: memref<8x128xf32, #tpu.memory_space<vmem>>) attributes {dimension_semantics = [#tpu.dimension_semantics<parallel>], iteration_bounds = array<i64: 3>, scalar_prefetch = 0 : i64, scratch_operands = 0 : i64, tpu.core_type = #tpu.core_type<tc>, window_params = [{transform_indices = @transform_0, window_bounds = array<i64: 3, 128>}, {pipeline_mode = #tpu.pipeline_mode<synchronous>, transform_indices = @transform_1, window_bounds = array<i64: 8, 1>}, {pipeline_mode = #tpu.pipeline_mode<synchronous>, transform_indices = @transform_2, window_bounds = array<i64: 8, 1>}, {pipeline_mode = #tpu.pipeline_mode<synchronous>, transform_indices = @transform_3, window_bounds = array<i64: 32, 3>}, {pipeline_mode = #tpu.pipeline_mode<synchronous>, transform_indices = @transform_4, window_bounds = array<i64: 32, 24>}, {pipeline_mode = #tpu.pipeline_mode<synchronous>, transform_indices = @transform_5, window_bounds = array<i64: 32, 1>}, {pipeline_mode = #tpu.pipeline_mode<synchronous>, transform_indices = @transform_6, window_bounds = array<i64: 32, 32>}, {pipeline_mode = #tpu.pipeline_mode<synchronous>, transform_indices = @transform_7, window_bounds = array<i64: 32, 1>}, {pipeline_mode = #tpu.pipeline_mode<synchronous>, transform_indices = @transform_8, window_bounds = array<i64: 3, 32>}, {pipeline_mode = #tpu.pipeline_mode<synchronous>, transform_indices = @transform_9, window_bounds = array<i64: 3, 1>}, {transform_indices = @transform_10, window_bounds = array<i64: 3, 128>}, {transform_indices = @transform_11, window_bounds = array<i64: 8, 128>}]} {
    %c0 = arith.constant 0 : index
    %c0_0 = arith.constant 0 : index
    %0 = vector.load %arg1[%c0, %c0_0] : memref<3x128xf32, #tpu.memory_space<vmem>>, vector<3x128xf32>
    %c0_1 = arith.constant 0 : index
    %c0_2 = arith.constant 0 : index
    %1 = vector.load %arg2[%c0_1, %c0_2] : memref<8x1xf32, #tpu.memory_space<vmem>>, vector<8x1xf32>
    %c0_3 = arith.constant 0 : index
    %c0_4 = arith.constant 0 : index
    %2 = vector.load %arg3[%c0_3, %c0_4] : memref<8x1xf32, #tpu.memory_space<vmem>>, vector<8x1xf32>
    %3 = vector.extract_strided_slice %0 {offsets = [0, 0], sizes = [1, 128], strides = [1, 1]} : vector<3x128xf32> to vector<1x128xf32>
    %4 = vector.broadcast %1 : vector<8x1xf32> to vector<8x128xf32>
    %5 = vector.broadcast %3 : vector<1x128xf32> to vector<8x128xf32>
    %6 = arith.mulf %4, %5 : vector<8x128xf32>
    %7 = vector.broadcast %2 : vector<8x1xf32> to vector<8x128xf32>
    %8 = arith.addf %6, %7 : vector<8x128xf32>
    %9 = vector.extract_strided_slice %0 {offsets = [1, 0], sizes = [1, 128], strides = [1, 1]} : vector<3x128xf32> to vector<1x128xf32>
    %10 = vector.broadcast %1 : vector<8x1xf32> to vector<8x128xf32>
    %11 = vector.broadcast %9 : vector<1x128xf32> to vector<8x128xf32>
    %12 = arith.mulf %10, %11 : vector<8x128xf32>
    %13 = vector.broadcast %2 : vector<8x1xf32> to vector<8x128xf32>
    %14 = arith.addf %12, %13 : vector<8x128xf32>
    %15 = vector.extract_strided_slice %0 {offsets = [2, 0], sizes = [1, 128], strides = [1, 1]} : vector<3x128xf32> to vector<1x128xf32>
    %16 = vector.broadcast %1 : vector<8x1xf32> to vector<8x128xf32>
    %17 = vector.broadcast %15 : vector<1x128xf32> to vector<8x128xf32>
    %18 = arith.mulf %16, %17 : vector<8x128xf32>
    %19 = vector.broadcast %2 : vector<8x1xf32> to vector<8x128xf32>
    %20 = arith.addf %18, %19 : vector<8x128xf32>
    %21 = tpu.concatenate %8, %14, %20 in 0 : vector<8x128xf32>, vector<8x128xf32>, vector<8x128xf32> -> vector<24x128xf32>
    %22 = math.sin %21 : vector<24x128xf32>
    %23 = arith.truncf %0 : vector<3x128xf32> to vector<3x128xbf16>
    %24 = arith.truncf %22 : vector<24x128xf32> to vector<24x128xbf16>
    %c0_5 = arith.constant 0 : index
    %c0_6 = arith.constant 0 : index
    %25 = vector.load %arg4[%c0_5, %c0_6] : memref<32x3xbf16, #tpu.memory_space<vmem>>, vector<32x3xbf16>
    %cst = arith.constant dense<0.000000e+00> : vector<32x128xf32>
    %26 = tpu.matmul %25, %23, %cst {dimension_numbers = #tpu.dot_dimension_numbers<[1], [0], [0], [1], [0, 0, 1, 1], [], []>} : vector<32x3xbf16>, vector<3x128xbf16>, vector<32x128xf32> -> vector<32x128xf32>
    %c0_7 = arith.constant 0 : index
    %c0_8 = arith.constant 0 : index
    %27 = vector.load %arg5[%c0_7, %c0_8] : memref<32x24xbf16, #tpu.memory_space<vmem>>, vector<32x24xbf16>
    %cst_9 = arith.constant dense<0.000000e+00> : vector<32x128xf32>
    %28 = tpu.matmul %27, %24, %cst_9 {dimension_numbers = #tpu.dot_dimension_numbers<[1], [0], [0], [1], [0, 0, 1, 1], [], []>} : vector<32x24xbf16>, vector<24x128xbf16>, vector<32x128xf32> -> vector<32x128xf32>
    %29 = arith.addf %26, %28 : vector<32x128xf32>
    %c0_10 = arith.constant 0 : index
    %c0_11 = arith.constant 0 : index
    %30 = vector.load %arg6[%c0_10, %c0_11] : memref<32x1xf32, #tpu.memory_space<vmem>>, vector<32x1xf32>
    %31 = vector.broadcast %30 : vector<32x1xf32> to vector<32x128xf32>
    %32 = arith.addf %29, %31 : vector<32x128xf32>
    %cst_12 = arith.constant 0.000000e+00 : f32
    %33 = vector.broadcast %cst_12 : f32 to vector<32x128xf32>
    %34 = arith.maximumf %32, %33 : vector<32x128xf32>
    %c0_13 = arith.constant 0 : index
    %c0_14 = arith.constant 0 : index
    %35 = vector.load %arg7[%c0_13, %c0_14] : memref<32x32xbf16, #tpu.memory_space<vmem>>, vector<32x32xbf16>
    %36 = arith.truncf %34 : vector<32x128xf32> to vector<32x128xbf16>
    %cst_15 = arith.constant dense<0.000000e+00> : vector<32x128xf32>
    %37 = tpu.matmul %35, %36, %cst_15 {dimension_numbers = #tpu.dot_dimension_numbers<[1], [0], [0], [1], [0, 0, 1, 1], [], []>} : vector<32x32xbf16>, vector<32x128xbf16>, vector<32x128xf32> -> vector<32x128xf32>
    %c0_16 = arith.constant 0 : index
    %c0_17 = arith.constant 0 : index
    %38 = vector.load %arg8[%c0_16, %c0_17] : memref<32x1xf32, #tpu.memory_space<vmem>>, vector<32x1xf32>
    %39 = vector.broadcast %38 : vector<32x1xf32> to vector<32x128xf32>
    %40 = arith.addf %37, %39 : vector<32x128xf32>
    %cst_18 = arith.constant 0.000000e+00 : f32
    %41 = vector.broadcast %cst_18 : f32 to vector<32x128xf32>
    %42 = arith.maximumf %40, %41 : vector<32x128xf32>
    %c0_19 = arith.constant 0 : index
    %c0_20 = arith.constant 0 : index
    %43 = vector.load %arg9[%c0_19, %c0_20] : memref<3x32xbf16, #tpu.memory_space<vmem>>, vector<3x32xbf16>
    %44 = arith.truncf %42 : vector<32x128xf32> to vector<32x128xbf16>
    %cst_21 = arith.constant dense<0.000000e+00> : vector<3x128xf32>
    %45 = tpu.matmul %43, %44, %cst_21 {dimension_numbers = #tpu.dot_dimension_numbers<[1], [0], [0], [1], [0, 0, 1, 1], [], []>} : vector<3x32xbf16>, vector<32x128xbf16>, vector<3x128xf32> -> vector<3x128xf32>
    %c0_22 = arith.constant 0 : index
    %c0_23 = arith.constant 0 : index
    %46 = vector.load %arg10[%c0_22, %c0_23] : memref<3x1xf32, #tpu.memory_space<vmem>>, vector<3x1xf32>
    %47 = vector.broadcast %46 : vector<3x1xf32> to vector<3x128xf32>
    %48 = arith.addf %45, %47 : vector<3x128xf32>
    %49 = arith.addf %0, %48 : vector<3x128xf32>
    %c0_24 = arith.constant 0 : index
    %c0_25 = arith.constant 0 : index
    %50 = vector.load %arg11[%c0_24, %c0_25] : memref<3x128xf32, #tpu.memory_space<vmem>>, vector<3x128xf32>
    tpu.vector_store %arg11[%c0_24, %c0_25], %49 {strides = array<i32>} : memref<3x128xf32, #tpu.memory_space<vmem>>, vector<3x128xf32>,
    %c128_i32 = arith.constant 128 : i32
    %51 = arith.muli %arg0, %c128_i32 : i32
    %52 = tpu.iota {dimensions = array<i32: 1>} : vector<1x128xi32>
    %53 = vector.broadcast %51 : i32 to vector<1x128xi32>
    %54 = arith.addi %53, %52 : vector<1x128xi32>
    %55 = arith.mulf %48, %48 : vector<3x128xf32>
    %cst_26 = arith.constant dense<0.000000e+00> : vector<128xf32>
    %56 = vector.multi_reduction <add>, %55, %cst_26 [0] : vector<3x128xf32> to vector<128xf32>
    %57 = vector.shape_cast %56 : vector<128xf32> to vector<1x128xf32>
    %c300_i32 = arith.constant 300 : i32
    %58 = vector.broadcast %c300_i32 : i32 to vector<1x128xi32>
    %59 = arith.cmpi slt, %54, %58 : vector<1x128xi32>
    %cst_27 = arith.constant 0.000000e+00 : f32
    %60 = vector.broadcast %cst_27 : f32 to vector<1x128xf32>
    %61 = arith.select %59, %57, %60 : vector<1x128xi1>, vector<1x128xf32>
    %62 = vector.shape_cast %61 : vector<1x128xf32> to vector<1x1x128xf32>
    %cst_28 = arith.constant dense<0.000000e+00> : vector<1xf32>
    %63 = vector.multi_reduction <add>, %62, %cst_28 [1, 2] : vector<1x1x128xf32> to vector<1xf32>
    %64 = vector.shape_cast %63 : vector<1xf32> to vector<1x1x1xf32>
    %65 = vector.extract %64[0, 0, 0] : f32 from vector<1x1x1xf32>
    %66 = vector.broadcast %65 : f32 to vector<8x128xf32>
    %c0_29 = arith.constant 0 : index
    %c0_30 = arith.constant 0 : index
    %67 = vector.load %arg12[%c0_29, %c0_30] : memref<8x128xf32, #tpu.memory_space<vmem>>, vector<8x128xf32>
    tpu.vector_store %arg12[%c0_29, %c0_30], %66 {strides = array<i32>} : memref<8x128xf32, #tpu.memory_space<vmem>>, vector<8x128xf32>,
    return
  }
  func.func @transform_0(%arg0: i32) -> (i32, i32) {
    %c0_i32 = arith.constant 0 : i32
    %c0_i32_0 = arith.constant 0 : i32
    return %c0_i32, %arg0 : i32, i32
  }
  func.func @transform_1(%arg0: i32) -> (i32, i32) {
    %c0_i32 = arith.constant 0 : i32
    %c0_i32_0 = arith.constant 0 : i32
    %c0_i32_1 = arith.constant 0 : i32
    return %c0_i32, %c0_i32_0 : i32, i32
  }
  func.func @transform_2(%arg0: i32) -> (i32, i32) {
    %c0_i32 = arith.constant 0 : i32
    %c0_i32_0 = arith.constant 0 : i32
    %c0_i32_1 = arith.constant 0 : i32
    return %c0_i32, %c0_i32_0 : i32, i32
  }
  func.func @transform_3(%arg0: i32) -> (i32, i32) {
    %c0_i32 = arith.constant 0 : i32
    %c0_i32_0 = arith.constant 0 : i32
    %c0_i32_1 = arith.constant 0 : i32
    return %c0_i32, %c0_i32_0 : i32, i32
  }
  func.func @transform_4(%arg0: i32) -> (i32, i32) {
    %c0_i32 = arith.constant 0 : i32
    %c0_i32_0 = arith.constant 0 : i32
    %c0_i32_1 = arith.constant 0 : i32
    return %c0_i32, %c0_i32_0 : i32, i32
  }
  func.func @transform_5(%arg0: i32) -> (i32, i32) {
    %c0_i32 = arith.constant 0 : i32
    %c0_i32_0 = arith.constant 0 : i32
    %c0_i32_1 = arith.constant 0 : i32
    return %c0_i32, %c0_i32_0 : i32, i32
  }
  func.func @transform_6(%arg0: i32) -> (i32, i32) {
    %c0_i32 = arith.constant 0 : i32
    %c0_i32_0 = arith.constant 0 : i32
    %c0_i32_1 = arith.constant 0 : i32
    return %c0_i32, %c0_i32_0 : i32, i32
  }
  func.func @transform_7(%arg0: i32) -> (i32, i32) {
    %c0_i32 = arith.constant 0 : i32
    %c0_i32_0 = arith.constant 0 : i32
    %c0_i32_1 = arith.constant 0 : i32
    return %c0_i32, %c0_i32_0 : i32, i32
  }
  func.func @transform_8(%arg0: i32) -> (i32, i32) {
    %c0_i32 = arith.constant 0 : i32
    %c0_i32_0 = arith.constant 0 : i32
    %c0_i32_1 = arith.constant 0 : i32
    return %c0_i32, %c0_i32_0 : i32, i32
  }
  func.func @transform_9(%arg0: i32) -> (i32, i32) {
    %c0_i32 = arith.constant 0 : i32
    %c0_i32_0 = arith.constant 0 : i32
    %c0_i32_1 = arith.constant 0 : i32
    return %c0_i32, %c0_i32_0 : i32, i32
  }
  func.func @transform_10(%arg0: i32) -> (i32, i32) {
    %c0_i32 = arith.constant 0 : i32
    %c0_i32_0 = arith.constant 0 : i32
    return %c0_i32, %arg0 : i32, i32
  }
  func.func @transform_11(%arg0: i32) -> (i32, i32) {
    %c0_i32 = arith.constant 0 : i32
    %c0_i32_0 = arith.constant 0 : i32
    return %c0_i32, %arg0 : i32, i32
  }
}

</mosaic_0001>

<llo_original>
// kernel: tpu_custom_call.1
$region0: #{tpu_custom_call.1}
  #allocation0 [shape = 'u32[]', space=smem, size = 0x4, offset = 0x4, fixed_abs, tag = 'smem constant byte address 0x4 - core index']
  #allocation1 [shape = 'u32[144,128]{1,0:T(1,128)}', space=vmem, size = 0x12000, scoped, tag = 'internal scratch']
  %s0 = inlined_call_operand.vmem [shape: f32[3,384], index: 0, kind: input, shape index: {}]
  %s1 = inlined_call_operand.vmem [shape: f32[8,1], index: 1, kind: input, shape index: {}]
  %s2 = inlined_call_operand.vmem [shape: f32[8,1], index: 2, kind: input, shape index: {}]
  %s3 = inlined_call_operand.vmem [shape: bf16[32,3], index: 3, kind: input, shape index: {}]
  %s4 = inlined_call_operand.vmem [shape: bf16[32,24], index: 4, kind: input, shape index: {}]
  %s5 = inlined_call_operand.vmem [shape: f32[32,1], index: 5, kind: input, shape index: {}]
  %s6 = inlined_call_operand.vmem [shape: bf16[32,32], index: 6, kind: input, shape index: {}]
  %s7 = inlined_call_operand.vmem [shape: f32[32,1], index: 7, kind: input, shape index: {}]
  %s8 = inlined_call_operand.vmem [shape: bf16[3,32], index: 8, kind: input, shape index: {}]
  %s9 = inlined_call_operand.vmem [shape: f32[3,1], index: 9, kind: input, shape index: {}]
  %s10 = inlined_call_operand.hbm [shape: f32[3,384], index: 10, kind: output, shape index: {0}]
  %s11 = inlined_call_operand.hbm [shape: f32[8,384], index: 11, kind: output, shape index: {1}]
  %12 = xla_tuple %s10, %s11
  %s13 = sld [smem:[#allocation0]]
  $region81: #{tpu_custom_call.1} parent=0
    _
  %s15 = ssub.s32 1, %s13
  %s16 = scalar_select 0, %s15, %s13
  $region1: #{tpu_custom_call.1} parent=0
    #allocation2 [shape = 'u8[4096]{0}', space=vmem, size = 0x1000, scoped, tag = 'output window, operand 0']
    #allocation3 [shape = 's32[2]{0}', space=sflag, size = 0x8, scoped, tag = 'scoped memory for tpu_custom_call.1']
    #allocation4 [shape = 'u8[8192]{0}', space=vmem, size = 0x2000, scoped, tag = 'output window, operand 1']
    #allocation5 [shape = 's32[2]{0}', space=sflag, size = 0x8, scoped, tag = 'scoped memory for tpu_custom_call.1']
    %17 = vsyncpa [#allocation3], 0
    %s18 = scalar_lea.sflag [#allocation3], 1
    %19 = vsyncpa %s18, 0
    %20 = vsyncpa [#allocation5], 0
    %s21 = scalar_lea.sflag [#allocation5], 1
    %22 = vsyncpa %s21, 0
    loop: start=0, step=1, limit=5
    $region2: #{tpu_custom_call.1} parent=1 // loop_pre_header
      _
    $region3: #{tpu_custom_call.1} parent=1 // loop_header
      %s24 = sphi 0, %s28
      %p25 = scmp.ge.s32.totalorder %s24, 5
      %s34 = sphi 0, %s36
      %s37 = sphi 0, %s34
      %s38 = sphi 0, %s37
      %s54 = sphi 0, %s38
      %s58 = sphi 0, %s58
      %s60 = sphi 0, %s58
      %s61 = sphi 0, %s60
      %s75 = sphi 0, %s61
      %s79 = sphi 0, %s79
      %s81 = sphi 0, %s79
      %s82 = sphi 0, %s81
      %s96 = sphi 0, %s82
      %s100 = sphi 0, %s100
      %s102 = sphi 0, %s100
      %s103 = sphi 0, %s102
      %s117 = sphi 0, %s103
      %s121 = sphi 0, %s121
      %s123 = sphi 0, %s121
      %s124 = sphi 0, %s123
      %s138 = sphi 0, %s124
      %s142 = sphi 0, %s142
      %s144 = sphi 0, %s142
      %s145 = sphi 0, %s144
      %s159 = sphi 0, %s145
      %s163 = sphi 0, %s163
      %s165 = sphi 0, %s163
      %s166 = sphi 0, %s165
      %s180 = sphi 0, %s166
      %s184 = sphi 0, %s184
      %s186 = sphi 0, %s184
      %s187 = sphi 0, %s186
      %s201 = sphi 0, %s187
      %s205 = sphi 0, %s205
      %s207 = sphi 0, %s205
      %s208 = sphi 0, %s207
      %s222 = sphi 0, %s208
      %s226 = sphi 0, %s226
      %s228 = sphi 0, %s226
      %s229 = sphi 0, %s228
      %s243 = sphi 0, %s229
      %s249 = sphi 0, %s251
      %s252 = sphi 0, %s249
      %s253 = sphi 0, %s252
      %s269 = sphi 0, %s253
      %s275 = sphi 0, %s277
      %s278 = sphi 0, %s275
      %s279 = sphi 0, %s278
      %s295 = sphi 0, %s279
    $region4: #{tpu_custom_call.1} parent=1 // loop_header_branch
      %27 = sbr.rel (%p25) target = $region8
    $region5: #{tpu_custom_call.1} parent=1 // loop_body
      %s29 = ssub.s32 %s24, 1
      %s30 = ssub.s32 %s24, 2
      %s31 = sadd.s32 %s24, 1
      %s32 = ssub.s32 %s24, %s31
      %p33 = scmp.eq.s32.totalorder %s32, 0
      %s35 = sadd.s32 %s34, 1
      %s36 = scalar_select %p33, %s34, %s35
      %p39 = pneg %p33
      %p40 = scmp.eq.s32.totalorder %s24, 2
      %p41 = por %p39, %p40
      %p42 = scmp.ne.s32.totalorder %s34, %s37
      %p43 = scmp.eq.s32.totalorder %s24, 0
      %p44 = por %p42, %p43
      %p45 = scmp.ne.s32.totalorder %s34, %s37
      %p46 = scmp.eq.s32.totalorder %s29, 2
      %p47 = por %p45, %p46
      %p48 = scmp.ne.s32.totalorder %s37, %s38
      %p49 = scmp.eq.s32.totalorder %s29, 0
      %p50 = por %p48, %p49
      %p51 = scmp.ne.s32.totalorder %s37, %s38
      %p52 = scmp.eq.s32.totalorder %s30, 2
      %p53 = por %p51, %p52
      %p55 = scmp.ne.s32.totalorder %s38, %s54
      %p56 = scmp.eq.s32.totalorder %s30, 0
      %p57 = por %p55, %p56
      %s59 = sadd.s32 %s58, 1
      %p62 = scmp.eq.s32.totalorder %s24, 2
      %p63 = scmp.ne.s32.totalorder %s58, %s60
      %p64 = scmp.eq.s32.totalorder %s24, 0
      %p65 = por %p63, %p64
      %p66 = scmp.ne.s32.totalorder %s58, %s60
      %p67 = scmp.eq.s32.totalorder %s29, 2
      %p68 = por %p66, %p67
      %p69 = scmp.ne.s32.totalorder %s60, %s61
      %p70 = scmp.eq.s32.totalorder %s29, 0
      %p71 = por %p69, %p70
      %p72 = scmp.ne.s32.totalorder %s60, %s61
      %p73 = scmp.eq.s32.totalorder %s30, 2
      %p74 = por %p72, %p73
      %p76 = scmp.ne.s32.totalorder %s61, %s75
      %p77 = scmp.eq.s32.totalorder %s30, 0
      %p78 = por %p76, %p77
      %s80 = sadd.s32 %s79, 1
      %p83 = scmp.eq.s32.totalorder %s24, 2
      %p84 = scmp.ne.s32.totalorder %s79, %s81
      %p85 = scmp.eq.s32.totalorder %s24, 0
      %p86 = por %p84, %p85
      %p87 = scmp.ne.s32.totalorder %s79, %s81
      %p88 = scmp.eq.s32.totalorder %s29, 2
      %p89 = por %p87, %p88
      %p90 = scmp.ne.s32.totalorder %s81, %s82
      %p91 = scmp.eq.s32.totalorder %s29, 0
      %p92 = por %p90, %p91
      %p93 = scmp.ne.s32.totalorder %s81, %s82
      %p94 = scmp.eq.s32.totalorder %s30, 2
      %p95 = por %p93, %p94
      %p97 = scmp.ne.s32.totalorder %s82, %s96
      %p98 = scmp.eq.s32.totalorder %s30, 0
      %p99 = por %p97, %p98
      %s101 = sadd.s32 %s100, 1
      %p104 = scmp.eq.s32.totalorder %s24, 2
      %p105 = scmp.ne.s32.totalorder %s100, %s102
      %p106 = scmp.eq.s32.totalorder %s24, 0
      %p107 = por %p105, %p106
      %p108 = scmp.ne.s32.totalorder %s100, %s102
      %p109 = scmp.eq.s32.totalorder %s29, 2
      %p110 = por %p108, %p109
      %p111 = scmp.ne.s32.totalorder %s102, %s103
      %p112 = scmp.eq.s32.totalorder %s29, 0
      %p113 = por %p111, %p112
      %p114 = scmp.ne.s32.totalorder %s102, %s103
      %p115 = scmp.eq.s32.totalorder %s30, 2
      %p116 = por %p114, %p115
      %p118 = scmp.ne.s32.totalorder %s103, %s117
      %p119 = scmp.eq.s32.totalorder %s30, 0
      %p120 = por %p118, %p119
      %s122 = sadd.s32 %s121, 1
      %p125 = scmp.eq.s32.totalorder %s24, 2
      %p126 = scmp.ne.s32.totalorder %s121, %s123
      %p127 = scmp.eq.s32.totalorder %s24, 0
      %p128 = por %p126, %p127
      %p129 = scmp.ne.s32.totalorder %s121, %s123
      %p130 = scmp.eq.s32.totalorder %s29, 2
      %p131 = por %p129, %p130
      %p132 = scmp.ne.s32.totalorder %s123, %s124
      %p133 = scmp.eq.s32.totalorder %s29, 0
      %p134 = por %p132, %p133
      %p135 = scmp.ne.s32.totalorder %s123, %s124
      %p136 = scmp.eq.s32.totalorder %s30, 2
      %p137 = por %p135, %p136
      %p139 = scmp.ne.s32.totalorder %s124, %s138
      %p140 = scmp.eq.s32.totalorder %s30, 0
      %p141 = por %p139, %p140
      %s143 = sadd.s32 %s142, 1
      %p146 = scmp.eq.s32.totalorder %s24, 2
      %p147 = scmp.ne.s32.totalorder %s142, %s144
      %p148 = scmp.eq.s32.totalorder %s24, 0
      %p149 = por %p147, %p148
      %p150 = scmp.ne.s32.totalorder %s142, %s144
      %p151 = scmp.eq.s32.totalorder %s29, 2
      %p152 = por %p150, %p151
      %p153 = scmp.ne.s32.totalorder %s144, %s145
      %p154 = scmp.eq.s32.totalorder %s29, 0
      %p155 = por %p153, %p154
      %p156 = scmp.ne.s32.totalorder %s144, %s145
      %p157 = scmp.eq.s32.totalorder %s30, 2
      %p158 = por %p156, %p157
      %p160 = scmp.ne.s32.totalorder %s145, %s159
      %p161 = scmp.eq.s32.totalorder %s30, 0
      %p162 = por %p160, %p161
      %s164 = sadd.s32 %s163, 1
      %p167 = scmp.eq.s32.totalorder %s24, 2
      %p168 = scmp.ne.s32.totalorder %s163, %s165
      %p169 = scmp.eq.s32.totalorder %s24, 0
      %p170 = por %p168, %p169
      %p171 = scmp.ne.s32.totalorder %s163, %s165
      %p172 = scmp.eq.s32.totalorder %s29, 2
      %p173 = por %p171, %p172
      %p174 = scmp.ne.s32.totalorder %s165, %s166
      %p175 = scmp.eq.s32.totalorder %s29, 0
      %p176 = por %p174, %p175
      %p177 = scmp.ne.s32.totalorder %s165, %s166
      %p178 = scmp.eq.s32.totalorder %s30, 2
      %p179 = por %p177, %p178
      %p181 = scmp.ne.s32.totalorder %s166, %s180
      %p182 = scmp.eq.s32.totalorder %s30, 0
      %p183 = por %p181, %p182
      %s185 = sadd.s32 %s184, 1
      %p188 = scmp.eq.s32.totalorder %s24, 2
      %p189 = scmp.ne.s32.totalorder %s184, %s186
      %p190 = scmp.eq.s32.totalorder %s24, 0
      %p191 = por %p189, %p190
      %p192 = scmp.ne.s32.totalorder %s184, %s186
      %p193 = scmp.eq.s32.totalorder %s29, 2
      %p194 = por %p192, %p193
      %p195 = scmp.ne.s32.totalorder %s186, %s187
      %p196 = scmp.eq.s32.totalorder %s29, 0
      %p197 = por %p195, %p196
      %p198 = scmp.ne.s32.totalorder %s186, %s187
      %p199 = scmp.eq.s32.totalorder %s30, 2
      %p200 = por %p198, %p199
      %p202 = scmp.ne.s32.totalorder %s187, %s201
      %p203 = scmp.eq.s32.totalorder %s30, 0
      %p204 = por %p202, %p203
      %s206 = sadd.s32 %s205, 1
      %p209 = scmp.eq.s32.totalorder %s24, 2
      %p210 = scmp.ne.s32.totalorder %s205, %s207
      %p211 = scmp.eq.s32.totalorder %s24, 0
      %p212 = por %p210, %p211
      %p213 = scmp.ne.s32.totalorder %s205, %s207
      %p214 = scmp.eq.s32.totalorder %s29, 2
      %p215 = por %p213, %p214
      %p216 = scmp.ne.s32.totalorder %s207, %s208
      %p217 = scmp.eq.s32.totalorder %s29, 0
      %p218 = por %p216, %p217
      %p219 = scmp.ne.s32.totalorder %s207, %s208
      %p220 = scmp.eq.s32.totalorder %s30, 2
      %p221 = por %p219, %p220
      %p223 = scmp.ne.s32.totalorder %s208, %s222
      %p224 = scmp.eq.s32.totalorder %s30, 0
      %p225 = por %p223, %p224
      %s227 = sadd.s32 %s226, 1
      %p230 = scmp.eq.s32.totalorder %s24, 2
      %p231 = scmp.ne.s32.totalorder %s226, %s228
      %p232 = scmp.eq.s32.totalorder %s24, 0
      %p233 = por %p231, %p232
      %p234 = scmp.ne.s32.totalorder %s226, %s228
      %p235 = scmp.eq.s32.totalorder %s29, 2
      %p236 = por %p234, %p235
      %p237 = scmp.ne.s32.totalorder %s228, %s229
      %p238 = scmp.eq.s32.totalorder %s29, 0
      %p239 = por %p237, %p238
      %p240 = scmp.ne.s32.totalorder %s228, %s229
      %p241 = scmp.eq.s32.totalorder %s30, 2
      %p242 = por %p240, %p241
      %p244 = scmp.ne.s32.totalorder %s229, %s243
      %p245 = scmp.eq.s32.totalorder %s30, 0
      %p246 = por %p244, %p245
      %s247 = ssub.s32 %s24, %s31
      %p248 = scmp.eq.s32.totalorder %s247, 0
      %s250 = sadd.s32 %s249, 1
      %s251 = scalar_select %p248, %s249, %s250
      %p254 = pneg %p248
      %p255 = scmp.eq.s32.totalorder %s24, 2
      %p256 = por %p254, %p255
      %p257 = scmp.ne.s32.totalorder %s249, %s252
      %p258 = scmp.eq.s32.totalorder %s24, 0
      %p259 = por %p257, %p258
      %p260 = scmp.ne.s32.totalorder %s249, %s252
      %p261 = scmp.eq.s32.totalorder %s29, 2
      %p262 = por %p260, %p261
      %p263 = scmp.ne.s32.totalorder %s252, %s253
      %p264 = scmp.eq.s32.totalorder %s29, 0
      %p265 = por %p263, %p264
      %p266 = scmp.ne.s32.totalorder %s252, %s253
      %p267 = scmp.eq.s32.totalorder %s30, 2
      %p268 = por %p266, %p267
      %p270 = scmp.ne.s32.totalorder %s253, %s269
      %p271 = scmp.eq.s32.totalorder %s30, 0
      %p272 = por %p270, %p271
      %s273 = ssub.s32 %s24, %s31
      %p274 = scmp.eq.s32.totalorder %s273, 0
      %s276 = sadd.s32 %s275, 1
      %s277 = scalar_select %p274, %s275, %s276
      %p280 = pneg %p274
      %p281 = scmp.eq.s32.totalorder %s24, 2
      %p282 = por %p280, %p281
      %p283 = scmp.ne.s32.totalorder %s275, %s278
      %p284 = scmp.eq.s32.totalorder %s24, 0
      %p285 = por %p283, %p284
      %p286 = scmp.ne.s32.totalorder %s275, %s278
      %p287 = scmp.eq.s32.totalorder %s29, 2
      %p288 = por %p286, %p287
      %p289 = scmp.ne.s32.totalorder %s278, %s279
      %p290 = scmp.eq.s32.totalorder %s29, 0
      %p291 = por %p289, %p290
      %p292 = scmp.ne.s32.totalorder %s278, %s279
      %p293 = scmp.eq.s32.totalorder %s30, 2
      %p294 = por %p292, %p293
      %p296 = scmp.ne.s32.totalorder %s279, %s295
      %p297 = scmp.eq.s32.totalorder %s30, 0
      %p298 = por %p296, %p297
      %p299 = scmp.le.s32.totalorder 1, %s24
      %p300 = scmp.lt.s32.totalorder %s24, 4
      %p301 = pnand %p299, %p300
      %p302 = pneg %p301
      // Predicated region
      $region9: #{tpu_custom_call.1} parent=5 // pred_check
        _
      $region10: #{tpu_custom_call.1} parent=5 // pred_check_branch
        %304 = sbr.rel (%p301) target = $region12
      $region11: #{tpu_custom_call.1} parent=5 // pred_region
        %s305 = ssub.s32 %s24, 1
        // Predicated region
        $region13: #{tpu_custom_call.1} parent=11 // pred_check
          %p306 = pneg %p71
        $region14: #{tpu_custom_call.1} parent=11 // pred_check_branch
          %308 = sbr.rel (%p306) target = $region16
        $region15: #{tpu_custom_call.1} parent=11 // pred_region
          _
        $region16: #{tpu_custom_call.1} parent=11 // pred_fallthru
          _
        // Predicated region
        $region17: #{tpu_custom_call.1} parent=11 // pred_check
          %p309 = pneg %p92
        $region18: #{tpu_custom_call.1} parent=11 // pred_check_branch
          %311 = sbr.rel (%p309) target = $region20
        $region19: #{tpu_custom_call.1} parent=11 // pred_region
          _
        $region20: #{tpu_custom_call.1} parent=11 // pred_fallthru
          _
        // Predicated region
        $region21: #{tpu_custom_call.1} parent=11 // pred_check
          %p312 = pneg %p113
        $region22: #{tpu_custom_call.1} parent=11 // pred_check_branch
          %314 = sbr.rel (%p312) target = $region24
        $region23: #{tpu_custom_call.1} parent=11 // pred_region
          _
        $region24: #{tpu_custom_call.1} parent=11 // pred_fallthru
          _
        // Predicated region
        $region25: #{tpu_custom_call.1} parent=11 // pred_check
          %p315 = pneg %p134
        $region26: #{tpu_custom_call.1} parent=11 // pred_check_branch
          %317 = sbr.rel (%p315) target = $region28
        $region27: #{tpu_custom_call.1} parent=11 // pred_region
          _
        $region28: #{tpu_custom_call.1} parent=11 // pred_fallthru
          _
        // Predicated region
        $region29: #{tpu_custom_call.1} parent=11 // pred_check
          %p318 = pneg %p155
        $region30: #{tpu_custom_call.1} parent=11 // pred_check_branch
          %320 = sbr.rel (%p318) target = $region32
        $region31: #{tpu_custom_call.1} parent=11 // pred_region
          _
        $region32: #{tpu_custom_call.1} parent=11 // pred_fallthru
          _
        // Predicated region
        $region33: #{tpu_custom_call.1} parent=11 // pred_check
          %p321 = pneg %p176
        $region34: #{tpu_custom_call.1} parent=11 // pred_check_branch
          %323 = sbr.rel (%p321) target = $region36
        $region35: #{tpu_custom_call.1} parent=11 // pred_region
          _
        $region36: #{tpu_custom_call.1} parent=11 // pred_fallthru
          _
        // Predicated region
        $region37: #{tpu_custom_call.1} parent=11 // pred_check
          %p324 = pneg %p197
        $region38: #{tpu_custom_call.1} parent=11 // pred_check_branch
          %326 = sbr.rel (%p324) target = $region40
        $region39: #{tpu_custom_call.1} parent=11 // pred_region
          _
        $region40: #{tpu_custom_call.1} parent=11 // pred_fallthru
          _
        // Predicated region
        $region41: #{tpu_custom_call.1} parent=11 // pred_check
          %p327 = pneg %p218
        $region42: #{tpu_custom_call.1} parent=11 // pred_check_branch
          %329 = sbr.rel (%p327) target = $region44
        $region43: #{tpu_custom_call.1} parent=11 // pred_region
          _
        $region44: #{tpu_custom_call.1} parent=11 // pred_fallthru
          _
        // Predicated region
        $region45: #{tpu_custom_call.1} parent=11 // pred_check
          %p330 = pneg %p239
        $region46: #{tpu_custom_call.1} parent=11 // pred_check_branch
          %332 = sbr.rel (%p330) target = $region48
        $region47: #{tpu_custom_call.1} parent=11 // pred_region
          _
        $region48: #{tpu_custom_call.1} parent=11 // pred_fallthru
          _
      $region12: #{tpu_custom_call.1} parent=5 // pred_fallthru
        _
      %p333 = scmp.lt.s32.totalorder %s24, 3
      // Predicated region
      $region49: #{tpu_custom_call.1} parent=5 // pred_check
        %p334 = pneg %p333
      $region50: #{tpu_custom_call.1} parent=5 // pred_check_branch
        %336 = sbr.rel (%p334) target = $region52
      $region51: #{tpu_custom_call.1} parent=5 // pred_region
        // Predicated region
        $region53: #{tpu_custom_call.1} parent=51 // pred_check
          %p337 = pneg %p44
        $region54: #{tpu_custom_call.1} parent=51 // pred_check_branch
          %339 = sbr.rel (%p337) target = $region56
        $region55: #{tpu_custom_call.1} parent=51 // pred_region
          %p340 = scmp.lt.s32.totalorder %s24, 2
          %s341 = scalar_select %p340, %s24, 2
          %s342 = smul.addr %s341, 4
          %s343 = scalar_lea.vmem %s0, %s342
        $region56: #{tpu_custom_call.1} parent=51 // pred_fallthru
          _
      $region52: #{tpu_custom_call.1} parent=5 // pred_fallthru
        _
      %p344 = scmp.le.s32.totalorder 1, %s24
      %p345 = scmp.lt.s32.totalorder %s24, 4
      %p346 = pnand %p344, %p345
      %p347 = pneg %p346
      // Predicated region
      $region57: #{tpu_custom_call.1} parent=5 // pred_check
        _
      $region58: #{tpu_custom_call.1} parent=5 // pred_check_branch
        %349 = sbr.rel (%p346) target = $region60
      $region59: #{tpu_custom_call.1} parent=5 // pred_region
        %s350 = ssub.s32 %s24, 1
        %p351 = scmp.lt.s32.totalorder %s29, 2
        %s352 = scalar_select %p351, %s29, 2
        %s353 = smul.addr %s352, 4
        %s354 = scalar_lea.vmem %s0, %s353
        %p355 = pneg %p50
        %p356 = pneg %p47
        %p357 = pneg %p71
        %p358 = pneg %p68
        %p359 = pneg %p92
        %p360 = pneg %p89
        %p361 = pneg %p113
        %p362 = pneg %p110
        %p363 = pneg %p134
        %p364 = pneg %p131
        %p365 = pneg %p155
        %p366 = pneg %p152
        %p367 = pneg %p176
        %p368 = pneg %p173
        %p369 = pneg %p197
        %p370 = pneg %p194
        %p371 = pneg %p218
        %p372 = pneg %p215
        %p373 = pneg %p239
        %p374 = pneg %p236
        %p375 = pneg %p265
        %p376 = pneg %p262
        %s377 = sand.u32 %s252, 1
        %s378 = scalar_lea.sflag [#allocation3], %s377
        %s379 = sand.u32 %s252, 1
        %s380 = smul.addr %s379, 4
        %s381 = scalar_lea.vmem [#allocation2], %s380
        %p382 = pneg %p291
        %p383 = pneg %p288
        %s384 = sand.u32 %s278, 1
        %s385 = scalar_lea.sflag [#allocation5], %s384
        %s386 = sand.u32 %s278, 1
        %s387 = smul.addr %s386, 8
        %s388 = scalar_lea.vmem [#allocation4], %s387
        %p389 = scmp.lt.s32.totalorder %s29, 2
        %s390 = scalar_select %p389, %s29, 2
        %s391 = smul.addr %s390, 4
        %s392 = scalar_lea.vmem %s0, %s391
        %v394 = vld [vmem:[%s392] sm:$0x7]
        %v395 = vld [vmem:[%s1] sm:$0xff]
        %v396 = vld [vmem:[%s2] sm:$0xff]
        %398 = vset.pattern.permute.xlu0 0
        %399 = vperm.xlu0 %398, %v395
        %v400 = vpop.permute.xlu0 %399
        %v402 = vlaneseq
        %v403 = vshrl.u32 %v402, 7
        %v404 = vsub.s32 0, %v403
        %v405 = vrot.slane %v394, %v404
        %v406 = vmul.f32 %v400, %v405
        %408 = vset.pattern.permute.xlu0 0
        %409 = vperm.xlu0 %408, %v396
        %v410 = vpop.permute.xlu0 %409
        %v412 = vadd.f32 %v406, %v410
        %v413 = vlaneseq
        %v414 = vshrl.u32 %v413, 7
        %v415 = vsub.s32 1, %v414
        %v416 = vrot.slane %v394, %v415
        %v417 = vmul.f32 %v400, %v416
        %v418 = vadd.f32 %v417, %v410
        %v419 = vlaneseq
        %v420 = vshrl.u32 %v419, 7
        %v421 = vsub.s32 2, %v420
        %v422 = vrot.slane %v394, %v421
        %v423 = vmul.f32 %v400, %v422
        %v424 = vadd.f32 %v423, %v410
        %v425 = vand.u32 2147483647, %v412
        %vm426 = vcmp.le.f32.partialorder %v425, 0.7853982
        %vm427 = vcmp.lt.s32.totalorder %v412, 0
        %v428 = vand.u32 %v412, 2139095040
        %v429 = vshrl.u32 %v428, 23
        %v430 = vsub.s32 %v429, 127
        %v431 = vand.u32 2147483647, %v412
        %v432 = vand.u32 %v431, 8388607
        %v433 = vor.u32 %v432, 8388608
        %v434 = vsub.s32 0, %v433
        %v435 = vadd.s32 %v430, 1
        %vm436 = vcmp.gt.s32.totalorder %v435, 0
        %v437 = vsel %vm436, %v435, 0
        %v438 = vshrl.u32 %v437, 5
        %v439 = vand.u32 %v437, 31
        %v440 = vsub.s32 32, %v439
        %v441 = vshrl.u32 683565275, %v440
        %v442 = vshll.u32 683565275, %v439
        %v443 = vshrl.u32 2475754826, %v440
        %v444 = vor.u32 %v442, %v443
        %v445 = vshll.u32 2475754826, %v439
        %v446 = vshrl.u32 2131351028, %v440
        %v447 = vor.u32 %v445, %v446
        %v448 = vshll.u32 2131351028, %v439
        %v449 = vshrl.u32 2102212464, %v440
        %v450 = vor.u32 %v448, %v449
        %v451 = vshll.u32 2102212464, %v439
        %v452 = vshrl.u32 920167782, %v440
        %v453 = vor.u32 %v451, %v452
        %v454 = vshll.u32 920167782, %v439
        %v455 = vshrl.u32 1326507024, %v440
        %v456 = vor.u32 %v454, %v455
        %vm457 = vcmp.lt.s32.totalorder %v438, 1
        %vm458 = vcmp.lt.s32.totalorder %v438, 2
        %vm459 = vcmp.lt.s32.totalorder %v438, 3
        %vm460 = vcmp.lt.s32.totalorder %v438, 4
        %v461 = vsel %vm457, %v441, %v444
        %v462 = vsel %vm460, %v450, 2102212464
        %v463 = vsel %vm459, %v447, %v462
        %v464 = vsel %vm458, %v461, %v463
        %v465 = vsel %vm457, %v444, %v447
        %v466 = vsel %vm460, %v453, 920167782
        %v467 = vsel %vm459, %v450, %v466
        %v468 = vsel %vm458, %v465, %v467
        %v469 = vsel %vm457, %v447, %v450
        %v470 = vsel %vm460, %v456, 1326507024
        %v471 = vsel %vm459, %v453, %v470
        %v472 = vsel %vm458, %v469, %v471
        %v473 = vshll.u32 %v433, 8
        %v474 = vmul.u32.u64.compose %v473, %v472
        %v475 = vextract.low.u32 %v474
        %v476 = vextract.high.u32 %v474
        %v477 = vmul.u32.u64.compose %v473, %v468
        %v478 = vextract.low.u32 %v477
        %v479 = vextract.high.u32 %v477
        %v480 = vmul.u32 %v473, %v464
        %v481 = vadd.s32 %v476, %v478
        %vm482 = vc.u32 %v476, %v478
        %v483 = vadd.s32 %v479, 1
        %v484 = vsel %vm482, %v483, %v479
        %v485 = vadd.s32 %v480, %v484
        %v486 = vadd.s32 %v485, 536870912
        %v487 = vshrl.u32 %v486, 30
        %v488 = vshll.u32 %v487, 30
        %v489 = vsub.s32 %v485, %v488
        %vm490 = vcmp.lt.s32.totalorder %v489, 0
        %v491 = vsub.s32 0, %v489
        %v492 = vsel %vm490, %v491, %v489
        %v493 = vclz %v492
        %v494 = vsub.s32 %v493, 2
        %vm495 = vcmp.gt.s32.totalorder 0, %v494
        %v496 = vsel %vm495, 0, %v494
        %v497 = vsub.s32 32, %v496
        %v498 = vshll.u32 %v489, %v496
        %v499 = vshrl.u32 %v481, %v497
        %v500 = vor.u32 %v498, %v499
        %v501 = vsub.s32 4294967266, %v496
        %v502 = vadd.s32 %v501, 127
        %v503 = vshll.u32 %v502, 23
        %v504 = vor.u32 4788187, %v503
        %v505 = vand.u32 2147483647, %v504
        %v507 = vcvt.s32.f32 %v500
        %v508 = vmul.f32 %v507, %v505
        %v509 = vxor.u32 %v508, 2147483648
        %v510 = vsel %vm427, %v509, %v508
        %v511 = vsub.s32 4, %v487
        %v512 = vsel %vm427, %v511, %v487
        %v513 = vsel %vm426, %v412, %v510
        %v514 = vsel %vm426, 0, %v512
        %v515 = vcosq.f32.pop %v513
        %v516 = vsinq.f32.pop %v513
        %vm517 = vweird.f32 %v412
        %v518 = vadd.s32 %v514, 3
        %v519 = vand.u32 %v518, 3
        %vm520 = vcmp.lt.s32.totalorder %v519, 2
        %vm521 = vcmp.eq.s32.totalorder %v519, 0
        %v522 = vxor.u32 %v516, 2147483648
        %v523 = vsel %vm521, %v515, %v522
        %vm524 = vcmp.eq.s32.totalorder %v519, 2
        %v525 = vxor.u32 %v515, 2147483648
        %v526 = vsel %vm524, %v525, %v516
        %v527 = vsel %vm520, %v523, %v526
        %v528 = vsel %vm517, nan, %v527
        %v529 = vand.u32 2147483647, %v418
        %vm530 = vcmp.le.f32.partialorder %v529, 0.7853982
        %vm531 = vcmp.lt.s32.totalorder %v418, 0
        %v532 = vand.u32 %v418, 2139095040
        %v533 = vshrl.u32 %v532, 23
        %v534 = vsub.s32 %v533, 127
        %v535 = vand.u32 2147483647, %v418
        %v536 = vand.u32 %v535, 8388607
        %v537 = vor.u32 %v536, 8388608
        %v538 = vsub.s32 0, %v537
        %v539 = vadd.s32 %v534, 1
        %vm540 = vcmp.gt.s32.totalorder %v539, 0
        %v541 = vsel %vm540, %v539, 0
        %v542 = vshrl.u32 %v541, 5
        %v543 = vand.u32 %v541, 31
        %v544 = vsub.s32 32, %v543
        %v545 = vshrl.u32 683565275, %v544
        %v546 = vshll.u32 683565275, %v543
        %v547 = vshrl.u32 2475754826, %v544
        %v548 = vor.u32 %v546, %v547
        %v549 = vshll.u32 2475754826, %v543
        %v550 = vshrl.u32 2131351028, %v544
        %v551 = vor.u32 %v549, %v550
        %v552 = vshll.u32 2131351028, %v543
        %v553 = vshrl.u32 2102212464, %v544
        %v554 = vor.u32 %v552, %v553
        %v555 = vshll.u32 2102212464, %v543
        %v556 = vshrl.u32 920167782, %v544
        %v557 = vor.u32 %v555, %v556
        %v558 = vshll.u32 920167782, %v543
        %v559 = vshrl.u32 1326507024, %v544
        %v560 = vor.u32 %v558, %v559
        %vm561 = vcmp.lt.s32.totalorder %v542, 1
        %vm562 = vcmp.lt.s32.totalorder %v542, 2
        %vm563 = vcmp.lt.s32.totalorder %v542, 3
        %vm564 = vcmp.lt.s32.totalorder %v542, 4
        %v565 = vsel %vm561, %v545, %v548
        %v566 = vsel %vm564, %v554, 2102212464
        %v567 = vsel %vm563, %v551, %v566
        %v568 = vsel %vm562, %v565, %v567
        %v569 = vsel %vm561, %v548, %v551
        %v570 = vsel %vm564, %v557, 920167782
        %v571 = vsel %vm563, %v554, %v570
        %v572 = vsel %vm562, %v569, %v571
        %v573 = vsel %vm561, %v551, %v554
        %v574 = vsel %vm564, %v560, 1326507024
        %v575 = vsel %vm563, %v557, %v574
        %v576 = vsel %vm562, %v573, %v575
        %v577 = vshll.u32 %v537, 8
        %v578 = vmul.u32.u64.compose %v577, %v576
        %v579 = vextract.low.u32 %v578
        %v580 = vextract.high.u32 %v578
        %v581 = vmul.u32.u64.compose %v577, %v572
        %v582 = vextract.low.u32 %v581
        %v583 = vextract.high.u32 %v581
        %v584 = vmul.u32 %v577, %v568
        %v585 = vadd.s32 %v580, %v582
        %vm586 = vc.u32 %v580, %v582
        %v587 = vadd.s32 %v583, 1
        %v588 = vsel %vm586, %v587, %v583
        %v589 = vadd.s32 %v584, %v588
        %v590 = vadd.s32 %v589, 536870912
        %v591 = vshrl.u32 %v590, 30
        %v592 = vshll.u32 %v591, 30
        %v593 = vsub.s32 %v589, %v592
        %vm594 = vcmp.lt.s32.totalorder %v593, 0
        %v595 = vsub.s32 0, %v593
        %v596 = vsel %vm594, %v595, %v593
        %v597 = vclz %v596
        %v598 = vsub.s32 %v597, 2
        %vm599 = vcmp.gt.s32.totalorder 0, %v598
        %v600 = vsel %vm599, 0, %v598
        %v601 = vsub.s32 32, %v600
        %v602 = vshll.u32 %v593, %v600
        %v603 = vshrl.u32 %v585, %v601
        %v604 = vor.u32 %v602, %v603
        %v605 = vsub.s32 4294967266, %v600
        %v606 = vadd.s32 %v605, 127
        %v607 = vshll.u32 %v606, 23
        %v608 = vor.u32 4788187, %v607
        %v609 = vand.u32 2147483647, %v608
        %v611 = vcvt.s32.f32 %v604
        %v612 = vmul.f32 %v611, %v609
        %v613 = vxor.u32 %v612, 2147483648
        %v614 = vsel %vm531, %v613, %v612
        %v615 = vsub.s32 4, %v591
        %v616 = vsel %vm531, %v615, %v591
        %v617 = vsel %vm530, %v418, %v614
        %v618 = vsel %vm530, 0, %v616
        %v619 = vcosq.f32.pop %v617
        %v620 = vsinq.f32.pop %v617
        %vm621 = vweird.f32 %v418
        %v622 = vadd.s32 %v618, 3
        %v623 = vand.u32 %v622, 3
        %vm624 = vcmp.lt.s32.totalorder %v623, 2
        %vm625 = vcmp.eq.s32.totalorder %v623, 0
        %v626 = vxor.u32 %v620, 2147483648
        %v627 = vsel %vm625, %v619, %v626
        %vm628 = vcmp.eq.s32.totalorder %v623, 2
        %v629 = vxor.u32 %v619, 2147483648
        %v630 = vsel %vm628, %v629, %v620
        %v631 = vsel %vm624, %v627, %v630
        %v632 = vsel %vm621, nan, %v631
        %v633 = vand.u32 2147483647, %v424
        %vm634 = vcmp.le.f32.partialorder %v633, 0.7853982
        %vm635 = vcmp.lt.s32.totalorder %v424, 0
        %v636 = vand.u32 %v424, 2139095040
        %v637 = vshrl.u32 %v636, 23
        %v638 = vsub.s32 %v637, 127
        %v639 = vand.u32 2147483647, %v424
        %v640 = vand.u32 %v639, 8388607
        %v641 = vor.u32 %v640, 8388608
        %v642 = vsub.s32 0, %v641
        %v643 = vadd.s32 %v638, 1
        %vm644 = vcmp.gt.s32.totalorder %v643, 0
        %v645 = vsel %vm644, %v643, 0
        %v646 = vshrl.u32 %v645, 5
        %v647 = vand.u32 %v645, 31
        %v648 = vsub.s32 32, %v647
        %v649 = vshrl.u32 683565275, %v648
        %v650 = vshll.u32 683565275, %v647
        %v651 = vshrl.u32 2475754826, %v648
        %v652 = vor.u32 %v650, %v651
        %v653 = vshll.u32 2475754826, %v647
        %v654 = vshrl.u32 2131351028, %v648
        %v655 = vor.u32 %v653, %v654
        %v656 = vshll.u32 2131351028, %v647
        %v657 = vshrl.u32 2102212464, %v648
        %v658 = vor.u32 %v656, %v657
        %v659 = vshll.u32 2102212464, %v647
        %v660 = vshrl.u32 920167782, %v648
        %v661 = vor.u32 %v659, %v660
        %v662 = vshll.u32 920167782, %v647
        %v663 = vshrl.u32 1326507024, %v648
        %v664 = vor.u32 %v662, %v663
        %vm665 = vcmp.lt.s32.totalorder %v646, 1
        %vm666 = vcmp.lt.s32.totalorder %v646, 2
        %vm667 = vcmp.lt.s32.totalorder %v646, 3
        %vm668 = vcmp.lt.s32.totalorder %v646, 4
        %v669 = vsel %vm665, %v649, %v652
        %v670 = vsel %vm668, %v658, 2102212464
        %v671 = vsel %vm667, %v655, %v670
        %v672 = vsel %vm666, %v669, %v671
        %v673 = vsel %vm665, %v652, %v655
        %v674 = vsel %vm668, %v661, 920167782
        %v675 = vsel %vm667, %v658, %v674
        %v676 = vsel %vm666, %v673, %v675
        %v677 = vsel %vm665, %v655, %v658
        %v678 = vsel %vm668, %v664, 1326507024
        %v679 = vsel %vm667, %v661, %v678
        %v680 = vsel %vm666, %v677, %v679
        %v681 = vshll.u32 %v641, 8
        %v682 = vmul.u32.u64.compose %v681, %v680
        %v683 = vextract.low.u32 %v682
        %v684 = vextract.high.u32 %v682
        %v685 = vmul.u32.u64.compose %v681, %v676
        %v686 = vextract.low.u32 %v685
        %v687 = vextract.high.u32 %v685
        %v688 = vmul.u32 %v681, %v672
        %v689 = vadd.s32 %v684, %v686
        %vm690 = vc.u32 %v684, %v686
        %v691 = vadd.s32 %v687, 1
        %v692 = vsel %vm690, %v691, %v687
        %v693 = vadd.s32 %v688, %v692
        %v694 = vadd.s32 %v693, 536870912
        %v695 = vshrl.u32 %v694, 30
        %v696 = vshll.u32 %v695, 30
        %v697 = vsub.s32 %v693, %v696
        %vm698 = vcmp.lt.s32.totalorder %v697, 0
        %v699 = vsub.s32 0, %v697
        %v700 = vsel %vm698, %v699, %v697
        %v701 = vclz %v700
        %v702 = vsub.s32 %v701, 2
        %vm703 = vcmp.gt.s32.totalorder 0, %v702
        %v704 = vsel %vm703, 0, %v702
        %v705 = vsub.s32 32, %v704
        %v706 = vshll.u32 %v697, %v704
        %v707 = vshrl.u32 %v689, %v705
        %v708 = vor.u32 %v706, %v707
        %v709 = vsub.s32 4294967266, %v704
        %v710 = vadd.s32 %v709, 127
        %v711 = vshll.u32 %v710, 23
        %v712 = vor.u32 4788187, %v711
        %v713 = vand.u32 2147483647, %v712
        %v715 = vcvt.s32.f32 %v708
        %v716 = vmul.f32 %v715, %v713
        %v717 = vxor.u32 %v716, 2147483648
        %v718 = vsel %vm635, %v717, %v716
        %v719 = vsub.s32 4, %v695
        %v720 = vsel %vm635, %v719, %v695
        %v721 = vsel %vm634, %v424, %v718
        %v722 = vsel %vm634, 0, %v720
        %v723 = vcosq.f32.pop %v721
        %v724 = vsinq.f32.pop %v721
        %vm725 = vweird.f32 %v424
        %v726 = vadd.s32 %v722, 3
        %v727 = vand.u32 %v726, 3
        %vm728 = vcmp.lt.s32.totalorder %v727, 2
        %vm729 = vcmp.eq.s32.totalorder %v727, 0
        %v730 = vxor.u32 %v724, 2147483648
        %v731 = vsel %vm729, %v723, %v730
        %vm732 = vcmp.eq.s32.totalorder %v727, 2
        %v733 = vxor.u32 %v723, 2147483648
        %v734 = vsel %vm732, %v733, %v724
        %v735 = vsel %vm728, %v731, %v734
        %v736 = vsel %vm725, nan, %v735
        %v737 = vpack.c.bf16 %v394, %v394
        %v738 = vpack.c.bf16 %v632, %v528
        %v739 = vpack.c.bf16 %v736, %v736
        %v740 = vld [vmem:[%s3] sm:$0xf]
        %v741 = vld [vmem:[%s3 + $0x4] sm:$0xf]
        %v742 = vld [vmem:[%s3 + $0x8] sm:$0xf]
        %v743 = vld [vmem:[%s3 + $0xc] sm:$0xf]
        %v744 = vld [vmem:[%s4] sm:$0xf]
        %v745 = vld [vmem:[%s4 + $0x4] sm:$0xf]
        %v746 = vld [vmem:[%s4 + $0x8] sm:$0xf]
        %v747 = vld [vmem:[%s4 + $0xc] sm:$0xf]
        %v752 = vunpack.c.l.b16 %v744
        %v753 = vunpack.c.l.b16 %v745
        %v754 = vunpack.c.l.b16 %v746
        %v755 = vunpack.c.l.b16 %v747
        %v756 = vpack.c.b16 %v753, %v752
        %v757 = vpack.c.b16 %v755, %v754
        %vm758 = vcmask 195584
        %v760 = vsel %vm758, %v756, 0
        %v763 = vsel %vm758, %v757, 0
        %vm765 = vcmask 1043456
        %v767 = vsel %vm765, %v739, 0
        %769 = vmatprep.subr.bf16.mxu0 0
        %770 = vmatpush1.bf16.msra.mxu0 0
        %771 = vmatprep.subr.bf16.mxu0 0
        %772 = vmatpush1.bf16.msra.mxu0 0
        %773 = vmatprep.subr.bf16.mxu0 0
        %774 = vmatpush1.bf16.msra.mxu0 0
        %775 = vmatprep.subr.bf16.mxu0 0
        %776 = vmatpush1.bf16.msra.mxu0 0
        %777 = vmatprep.subr.bf16.mxu0 0
        %778 = vmatpush1.bf16.msra.mxu0 0
        %779 = vmatprep.subr.bf16.mxu0 0
        %780 = vmatpush1.bf16.msra.mxu0 0
        %781 = vmatprep.subr.bf16.mxu0 0
        %782 = vmatpush1.bf16.msra.mxu0 %v767
        %783 = vmatprep.subr.bf16.mxu0 0
        %784 = vmatpush1.bf16.msra.mxu0 %v738
        %785 = vmatprep.subr.bf16.mxu0 0
        %786 = vmatpush2.bf16.msra.mxu0 0
        %787 = vmatprep.subr.bf16.mxu0 0
        %788 = vmatpush2.bf16.msra.mxu0 0
        %789 = vmatprep.subr.bf16.mxu0 0
        %790 = vmatpush2.bf16.msra.mxu0 0
        %791 = vmatprep.subr.bf16.mxu0 0
        %792 = vmatpush2.bf16.msra.mxu0 0
        %793 = vmatprep.subr.bf16.mxu0 0
        %794 = vmatpush2.bf16.msra.mxu0 0
        %795 = vmatprep.subr.bf16.mxu0 0
        %796 = vmatpush2.bf16.msra.mxu0 0
        %797 = vmatprep.subr.bf16.mxu0 0
        %798 = vmatpush2.bf16.msra.mxu0 0
        %799 = vmatprep.subr.bf16.mxu0 0
        %800 = vmatpush2.bf16.msra.mxu0 0
        %801 = vmatprep.mubr.bf16.mxu0 0
        %802 = vmatmul.mubr.bf16.gmra.mxu0 %v760
        %v803 = vpop.f32.mrf.mxu0
        %v804 = vadd.f32 0.0, %v803
        %v805 = vpop.f32.mrf.mxu0
        %v806 = vpop.f32.mrf.mxu0
        %v807 = vadd.f32 0.0, %v806
        %v808 = vpop.f32.mrf.mxu0
        %809 = vmatprep.mubr.bf16.mxu0 0
        %810 = vmatmul.mubr.bf16.gmra.mxu0 %v763
        %v811 = vpop.f32.mrf.mxu0
        %v812 = vadd.f32 0.0, %v811
        %v813 = vpop.f32.mrf.mxu0
        %v814 = vpop.f32.mrf.mxu0
        %v815 = vadd.f32 0.0, %v814
        %v816 = vpop.f32.mrf.mxu0
        %817 = vdwg.mxu0
        %v822 = vunpack.c.l.b16 %v740
        %v823 = vunpack.c.l.b16 %v741
        %v824 = vunpack.c.l.b16 %v742
        %v825 = vunpack.c.l.b16 %v743
        %v826 = vpack.c.b16 %v823, %v822
        %v827 = vpack.c.b16 %v825, %v824
        %vm828 = vcmask 23552
        %v830 = vsel %vm828, %v826, 0
        %v833 = vsel %vm828, %v827, 0
        %vm835 = vcmask 1040384
        %vm836 = vcmask 1041408
        %v837 = vsel %vm835, 4294967295, 65535
        %v838 = vsel %vm836, %v837, 0
        %v840 = vand.u32 %v737, %v838
        %842 = vmatprep.subr.bf16.mxu0 0
        %843 = vmatpush1.bf16.msra.mxu0 0
        %844 = vmatprep.subr.bf16.mxu0 0
        %845 = vmatpush1.bf16.msra.mxu0 0
        %846 = vmatprep.subr.bf16.mxu0 0
        %847 = vmatpush1.bf16.msra.mxu0 0
        %848 = vmatprep.subr.bf16.mxu0 0
        %849 = vmatpush1.bf16.msra.mxu0 0
        %850 = vmatprep.subr.bf16.mxu0 0
        %851 = vmatpush1.bf16.msra.mxu0 0
        %852 = vmatprep.subr.bf16.mxu0 0
        %853 = vmatpush1.bf16.msra.mxu0 0
        %854 = vmatprep.subr.bf16.mxu0 0
        %855 = vmatpush1.bf16.msra.mxu0 0
        %856 = vmatprep.subr.bf16.mxu0 0
        %857 = vmatpush1.bf16.msra.mxu0 %v840
        %858 = vmatprep.subr.bf16.mxu0 0
        %859 = vmatpush2.bf16.msra.mxu0 0
        %860 = vmatprep.subr.bf16.mxu0 0
        %861 = vmatpush2.bf16.msra.mxu0 0
        %862 = vmatprep.subr.bf16.mxu0 0
        %863 = vmatpush2.bf16.msra.mxu0 0
        %864 = vmatprep.subr.bf16.mxu0 0
        %865 = vmatpush2.bf16.msra.mxu0 0
        %866 = vmatprep.subr.bf16.mxu0 0
        %867 = vmatpush2.bf16.msra.mxu0 0
        %868 = vmatprep.subr.bf16.mxu0 0
        %869 = vmatpush2.bf16.msra.mxu0 0
        %870 = vmatprep.subr.bf16.mxu0 0
        %871 = vmatpush2.bf16.msra.mxu0 0
        %872 = vmatprep.subr.bf16.mxu0 0
        %873 = vmatpush2.bf16.msra.mxu0 0
        %874 = vmatprep.mubr.bf16.mxu0 0
        %875 = vmatmul.mubr.bf16.gmra.mxu0 %v830
        %v876 = vpop.f32.mrf.mxu0
        %v877 = vadd.f32 %v804, %v876
        %v878 = vpop.f32.mrf.mxu0
        %v879 = vpop.f32.mrf.mxu0
        %v880 = vadd.f32 %v807, %v879
        %v881 = vpop.f32.mrf.mxu0
        %882 = vmatprep.mubr.bf16.mxu0 0
        %883 = vmatmul.mubr.bf16.gmra.mxu0 %v833
        %v884 = vpop.f32.mrf.mxu0
        %v885 = vadd.f32 %v812, %v884
        %v886 = vpop.f32.mrf.mxu0
        %v887 = vpop.f32.mrf.mxu0
        %v888 = vadd.f32 %v815, %v887
        %v889 = vpop.f32.mrf.mxu0
        %890 = vdwg.mxu0
        %v891 = vld [vmem:[%s5] sm:$0xff]
        %v892 = vld [vmem:[%s5 + $0x8] sm:$0xff]
        %v893 = vld [vmem:[%s5 + $0x10] sm:$0xff]
        %v894 = vld [vmem:[%s5 + $0x18] sm:$0xff]
        %896 = vset.pattern.permute.xlu0 0
        %897 = vperm.xlu0 %896, %v891
        %v898 = vpop.permute.xlu0 %897
        %901 = vset.pattern.permute.xlu0 0
        %902 = vperm.xlu0 %901, %v892
        %v903 = vpop.permute.xlu0 %902
        %906 = vset.pattern.permute.xlu0 0
        %907 = vperm.xlu0 %906, %v893
        %v908 = vpop.permute.xlu0 %907
        %911 = vset.pattern.permute.xlu0 0
        %912 = vperm.xlu0 %911, %v894
        %v913 = vpop.permute.xlu0 %912
        %v915 = vadd.f32 %v877, %v898
        %v916 = vadd.f32 %v880, %v903
        %v917 = vadd.f32 %v885, %v908
        %v918 = vadd.f32 %v888, %v913
        %v919 = vmax.f32 %v915, 0.0
        %v920 = vmax.f32 %v916, 0.0
        %v921 = vmax.f32 %v917, 0.0
        %v922 = vmax.f32 %v918, 0.0
        %v923 = vld [vmem:[%s6] sm:$0xf]
        %v924 = vld [vmem:[%s6 + $0x4] sm:$0xf]
        %v925 = vld [vmem:[%s6 + $0x8] sm:$0xf]
        %v926 = vld [vmem:[%s6 + $0xc] sm:$0xf]
        %v927 = vpack.c.bf16 %v920, %v919
        %v928 = vpack.c.bf16 %v922, %v921
        %v929 = vld [vmem:[%s7] sm:$0xff]
        %v930 = vld [vmem:[%s7 + $0x8] sm:$0xff]
        %v931 = vld [vmem:[%s7 + $0x10] sm:$0xff]
        %v932 = vld [vmem:[%s7 + $0x18] sm:$0xff]
        %934 = vset.pattern.permute.xlu0 0
        %935 = vperm.xlu0 %934, %v929
        %v936 = vpop.permute.xlu0 %935
        %939 = vset.pattern.permute.xlu0 0
        %940 = vperm.xlu0 %939, %v930
        %v941 = vpop.permute.xlu0 %940
        %944 = vset.pattern.permute.xlu0 0
        %945 = vperm.xlu0 %944, %v931
        %v946 = vpop.permute.xlu0 %945
        %949 = vset.pattern.permute.xlu0 0
        %950 = vperm.xlu0 %949, %v932
        %v951 = vpop.permute.xlu0 %950
        %v957 = vunpack.c.l.b16 %v923
        %v958 = vunpack.c.l.b16 %v924
        %v959 = vunpack.c.l.b16 %v925
        %v960 = vunpack.c.l.b16 %v926
        %v961 = vpack.c.b16 %v958, %v957
        %v962 = vpack.c.b16 %v960, %v959
        %vm963 = vcmask 261120
        %v965 = vsel %vm963, %v961, 0
        %v968 = vsel %vm963, %v962, 0
        %970 = vmatprep.subr.bf16.mxu0 0
        %971 = vmatpush1.bf16.msra.mxu0 0
        %972 = vmatprep.subr.bf16.mxu0 0
        %973 = vmatpush1.bf16.msra.mxu0 0
        %974 = vmatprep.subr.bf16.mxu0 0
        %975 = vmatpush1.bf16.msra.mxu0 0
        %976 = vmatprep.subr.bf16.mxu0 0
        %977 = vmatpush1.bf16.msra.mxu0 0
        %978 = vmatprep.subr.bf16.mxu0 0
        %979 = vmatpush1.bf16.msra.mxu0 0
        %980 = vmatprep.subr.bf16.mxu0 0
        %981 = vmatpush1.bf16.msra.mxu0 0
        %982 = vmatprep.subr.bf16.mxu0 0
        %983 = vmatpush1.bf16.msra.mxu0 %v928
        %984 = vmatprep.subr.bf16.mxu0 0
        %985 = vmatpush1.bf16.msra.mxu0 %v927
        %986 = vmatprep.subr.bf16.mxu0 0
        %987 = vmatpush2.bf16.msra.mxu0 0
        %988 = vmatprep.subr.bf16.mxu0 0
        %989 = vmatpush2.bf16.msra.mxu0 0
        %990 = vmatprep.subr.bf16.mxu0 0
        %991 = vmatpush2.bf16.msra.mxu0 0
        %992 = vmatprep.subr.bf16.mxu0 0
        %993 = vmatpush2.bf16.msra.mxu0 0
        %994 = vmatprep.subr.bf16.mxu0 0
        %995 = vmatpush2.bf16.msra.mxu0 0
        %996 = vmatprep.subr.bf16.mxu0 0
        %997 = vmatpush2.bf16.msra.mxu0 0
        %998 = vmatprep.subr.bf16.mxu0 0
        %999 = vmatpush2.bf16.msra.mxu0 0
        %1000 = vmatprep.subr.bf16.mxu0 0
        %1001 = vmatpush2.bf16.msra.mxu0 0
        %1002 = vmatprep.mubr.bf16.mxu0 0
        %1003 = vmatmul.mubr.bf16.gmra.mxu0 %v965
        %v1004 = vpop.f32.mrf.mxu0
        %v1005 = vadd.f32 %v936, %v1004
        %v1006 = vpop.f32.mrf.mxu0
        %v1007 = vpop.f32.mrf.mxu0
        %v1008 = vadd.f32 %v941, %v1007
        %v1009 = vpop.f32.mrf.mxu0
        %1010 = vmatprep.mubr.bf16.mxu0 0
        %1011 = vmatmul.mubr.bf16.gmra.mxu0 %v968
        %v1012 = vpop.f32.mrf.mxu0
        %v1013 = vadd.f32 %v946, %v1012
        %v1014 = vpop.f32.mrf.mxu0
        %v1015 = vpop.f32.mrf.mxu0
        %v1016 = vadd.f32 %v951, %v1015
        %v1017 = vpop.f32.mrf.mxu0
        %1018 = vdwg.mxu0
        %v1019 = vmax.f32 %v1005, 0.0
        %v1020 = vmax.f32 %v1008, 0.0
        %v1021 = vmax.f32 %v1013, 0.0
        %v1022 = vmax.f32 %v1016, 0.0
        %v1023 = vld [vmem:[%s8] sm:$0x3]
        %v1024 = vpack.c.bf16 %v1020, %v1019
        %v1025 = vpack.c.bf16 %v1022, %v1021
        %v1026 = vld [vmem:[%s9] sm:$0x7]
        %1028 = vset.pattern.permute.xlu0 0
        %1029 = vperm.xlu0 %1028, %v1026
        %v1030 = vpop.permute.xlu0 %1029
        %v1033 = vsel %vm963, %v1023, 0
        %1035 = vmatprep.subr.bf16.mxu0 0
        %1036 = vmatpush1.bf16.msra.mxu0 0
        %1037 = vmatprep.subr.bf16.mxu0 0
        %1038 = vmatpush1.bf16.msra.mxu0 0
        %1039 = vmatprep.subr.bf16.mxu0 0
        %1040 = vmatpush1.bf16.msra.mxu0 0
        %1041 = vmatprep.subr.bf16.mxu0 0
        %1042 = vmatpush1.bf16.msra.mxu0 0
        %1043 = vmatprep.subr.bf16.mxu0 0
        %1044 = vmatpush1.bf16.msra.mxu0 0
        %1045 = vmatprep.subr.bf16.mxu0 0
        %1046 = vmatpush1.bf16.msra.mxu0 0
        %1047 = vmatprep.subr.bf16.mxu0 0
        %1048 = vmatpush1.bf16.msra.mxu0 %v1025
        %1049 = vmatprep.subr.bf16.mxu0 0
        %1050 = vmatpush1.bf16.msra.mxu0 %v1024
        %1051 = vmatprep.subr.bf16.mxu0 0
        %1052 = vmatpush2.bf16.msra.mxu0 0
        %1053 = vmatprep.subr.bf16.mxu0 0
        %1054 = vmatpush2.bf16.msra.mxu0 0
        %1055 = vmatprep.subr.bf16.mxu0 0
        %1056 = vmatpush2.bf16.msra.mxu0 0
        %1057 = vmatprep.subr.bf16.mxu0 0
        %1058 = vmatpush2.bf16.msra.mxu0 0
        %1059 = vmatprep.subr.bf16.mxu0 0
        %1060 = vmatpush2.bf16.msra.mxu0 0
        %1061 = vmatprep.subr.bf16.mxu0 0
        %1062 = vmatpush2.bf16.msra.mxu0 0
        %1063 = vmatprep.subr.bf16.mxu0 0
        %1064 = vmatpush2.bf16.msra.mxu0 0
        %1065 = vmatprep.subr.bf16.mxu0 0
        %1066 = vmatpush2.bf16.msra.mxu0 0
        %1067 = vmatprep.mubr.bf16.mxu0 0
        %1068 = vmatmul.mubr.bf16.gmra.mxu0 %v1033
        %v1069 = vpop.f32.mrf.mxu0
        %v1070 = vadd.f32 %v1030, %v1069
        %v1071 = vpop.f32.mrf.mxu0
        %v1072 = vpop.f32.mrf.mxu0
        %v1073 = vpop.f32.mrf.mxu0
        %1074 = vdwg.mxu0
        %v1075 = vadd.f32 %v394, %v1070
        %1076 = vst [vmem:[%s381] sm:$0x7] %v1075
        %s1077 = smul.u32 %s29, 128
        %v1078 = vlaneseq
        %v1079 = vand.u32 %v1078, 127
        %v1080 = vstv %s1077
        %v1081 = vadd.s32 %v1080, %v1079
        %v1082 = vmul.f32 %v1070, %v1070
        %vm1083 = vcmask 1042432
        %v1084 = vsel %vm1083, %v1082, 0.0
        %v1085 = vrot.slane %v1084, 4
        %v1086 = vadd.f32 %v1084, %v1085
        %v1087 = vrot.slane %v1086, 2
        %v1088 = vadd.f32 %v1086, %v1087
        %v1089 = vrot.slane %v1088, 1
        %v1090 = vadd.f32 %v1088, %v1089
        %vm1091 = vcmp.lt.s32.totalorder %v1081, 300
        %v1092 = vsel %vm1091, %v1090, 0.0
        %v1093 = vsel %vm835, %v1092, 0.0
        %1094 = vadd.xlane.f32.xlu0 %v1093
        %v1095 = vpop.xlane.xlu0 %1094
        %v1096 = vrot.slane %v1095, 4
        %v1097 = vadd.f32 %v1095, %v1096
        %v1098 = vrot.slane %v1097, 2
        %v1099 = vadd.f32 %v1097, %v1098
        %v1100 = vrot.slane %v1099, 1
        %v1101 = vadd.f32 %v1099, %v1100
        %s1102 = vtos %v1101
        %v1103 = vstv %s1102
        %1104 = vst [vmem:[%s388] sm:$0xff] %v1103
        %s1105 = sand.u32 %s252, 1
        %s1106 = scalar_lea.sflag [#allocation3], %s1105
        %s1107 = sand.u32 %s252, 1
        %s1108 = smul.addr %s1107, 4
        %s1109 = scalar_lea.vmem [#allocation2], %s1108
        %s1110 = sand.u32 %s278, 1
        %s1111 = scalar_lea.sflag [#allocation5], %s1110
        %s1112 = sand.u32 %s278, 1
        %s1113 = smul.addr %s1112, 8
        %s1114 = scalar_lea.vmem [#allocation4], %s1113
        // Predicated region
        $region61: #{tpu_custom_call.1} parent=59 // pred_check
          %p1115 = pneg %p262
        $region62: #{tpu_custom_call.1} parent=59 // pred_check_branch
          %1117 = sbr.rel (%p1115) target = $region64
        $region63: #{tpu_custom_call.1} parent=59 // pred_region
          %s1119 = ssub.s32 64, 64
          %1120 = vsyncadd %s1106, %s1119
          %s1121 = smul.addr %s29, 64
          %s1122 = scalar_lea.hbm %s10, %s1121
          %s1124 = sshll.u32 %s1109, 4
          %s1125 = int_to_ptr.vmem [resolvable:$true] %s1124
          %1127 = dma.vmem_to_hbm [thread:$0]  %s1125, 64, %s1122, %s1106
        $region64: #{tpu_custom_call.1} parent=59 // pred_fallthru
          _
        // Predicated region
        $region65: #{tpu_custom_call.1} parent=59 // pred_check
          %p1128 = pneg %p288
        $region66: #{tpu_custom_call.1} parent=59 // pred_check_branch
          %1130 = sbr.rel (%p1128) target = $region68
        $region67: #{tpu_custom_call.1} parent=59 // pred_region
          %s1132 = ssub.s32 128, 128
          %1133 = vsyncadd %s1111, %s1132
          %s1134 = smul.addr %s29, 128
          %s1135 = scalar_lea.hbm %s11, %s1134
          %s1137 = sshll.u32 %s1114, 4
          %s1138 = int_to_ptr.vmem [resolvable:$true] %s1137
          %1140 = dma.vmem_to_hbm [thread:$0]  %s1138, 128, %s1135, %s1111
        $region68: #{tpu_custom_call.1} parent=59 // pred_fallthru
          _
      $region60: #{tpu_custom_call.1} parent=5 // pred_fallthru
        _
      %p1141 = scmp.le.s32.totalorder 2, %s24
      // Predicated region
      $region69: #{tpu_custom_call.1} parent=5 // pred_check
        %p1142 = pneg %p1141
      $region70: #{tpu_custom_call.1} parent=5 // pred_check_branch
        %1144 = sbr.rel (%p1142) target = $region72
      $region71: #{tpu_custom_call.1} parent=5 // pred_region
        %s1145 = ssub.s32 %s24, 2
        // Predicated region
        $region73: #{tpu_custom_call.1} parent=71 // pred_check
          %p1146 = pneg %p268
        $region74: #{tpu_custom_call.1} parent=71 // pred_check_branch
          %1148 = sbr.rel (%p1146) target = $region76
        $region75: #{tpu_custom_call.1} parent=71 // pred_region
          %s1149 = sand.u32 %s253, 1
          %s1150 = scalar_lea.sflag [#allocation3], %s1149
          %s1151 = sand.u32 %s253, 1
          %s1152 = smul.addr %s1151, 4
          %s1153 = scalar_lea.vmem [#allocation2], %s1152
          %1154 = dma.done %s1150, 64
        $region76: #{tpu_custom_call.1} parent=71 // pred_fallthru
          _
        // Predicated region
        $region77: #{tpu_custom_call.1} parent=71 // pred_check
          %p1155 = pneg %p294
        $region78: #{tpu_custom_call.1} parent=71 // pred_check_branch
          %1157 = sbr.rel (%p1155) target = $region80
        $region79: #{tpu_custom_call.1} parent=71 // pred_region
          %s1158 = sand.u32 %s279, 1
          %s1159 = scalar_lea.sflag [#allocation5], %s1158
          %s1160 = sand.u32 %s279, 1
          %s1161 = smul.addr %s1160, 8
          %s1162 = scalar_lea.vmem [#allocation4], %s1161
          %1163 = dma.done %s1159, 128
        $region80: #{tpu_custom_call.1} parent=71 // pred_fallthru
          _
      $region72: #{tpu_custom_call.1} parent=5 // pred_fallthru
        _
    $region6: #{tpu_custom_call.1} parent=1 // loop_footer
      %s28 = sadd.s32 1, %s24
    $region7: #{tpu_custom_call.1} parent=1 // loop_footer_branch
      %23 = sbr.rel target = $region3
    $region8: #{tpu_custom_call.1} parent=1 // loop_exit
      _
    %1164 = vsyncpa [#allocation3], 1
    %s1165 = scalar_lea.sflag [#allocation3], 1
    %1166 = vsyncpa %s1165, 1
    %1167 = vsyncpa [#allocation5], 1
    %s1168 = scalar_lea.sflag [#allocation5], 1
    %1169 = vsyncpa %s1168, 1

</llo_original>
